<compile_context>
chip_gen: v5e
topology: v5e:2x2
jax: 0.10.0
libtpu: 0.0.40
codegen_flags: <defaults>
</compile_context>

<pallas_src>
import functools

import jax
import jax.numpy as jnp
from jax import lax
from jax.experimental import pallas as pl
from jax.experimental.pallas import tpu as pltpu


# ---------------------------------------------------------------------------
# Kernels
# ---------------------------------------------------------------------------

def _abs_kernel(x_ref, o_ref):
    o_ref[...] = jnp.abs(x_ref[...])


def _relu_kernel(x_ref, o_ref):
    x = x_ref[...]
    o_ref[...] = jnp.maximum(x, jnp.zeros((), dtype=x.dtype))


def _row_masked_kernel(x_ref, o_ref, *, tile_rows, num_channels, abs_channels):
    """Slab layout (N*C, H*W): the abs/relu choice is constant along a row,
    so the mask is a (TM, 1) column broadcast across lanes by jnp.where."""
    x = x_ref[...]                                        # (TM, TN)
    row0 = pl.program_id(0) * tile_rows                   # global first row
    local_rows = lax.broadcasted_iota(jnp.int32, (x.shape[0], 1), 0)
    ch = (row0 + local_rows) % num_channels               # row = n*C + c
    is_abs = ch < abs_channels                            # (TM, 1) bool
    o_ref[...] = jnp.where(is_abs, jnp.abs(x),
                           jnp.maximum(x, jnp.zeros((), dtype=x.dtype)))


def _flat_masked_kernel(x_ref, o_ref, *, tile_rows, lane_width, hw,
                        num_channels, abs_channels):
    """Lane-dense flat slab: channel < abs_channels iff
    (flat_element_index % (C*H*W)) < abs_channels*H*W."""
    x = x_ref[...]                                        # (TM, G)
    row0 = pl.program_id(0) * tile_rows
    r = row0 + lax.broadcasted_iota(jnp.int32, x.shape, 0)
    l = lax.broadcasted_iota(jnp.int32, x.shape, 1)
    flat = r * lane_width + l                             # global element idx
    is_abs = (flat % (num_channels * hw)) < (abs_channels * hw)
    o_ref[...] = jnp.where(is_abs, jnp.abs(x),
                           jnp.maximum(x, jnp.zeros((), dtype=x.dtype)))


# ---------------------------------------------------------------------------
# Tiling helpers
# ---------------------------------------------------------------------------

def _round_up(v: int, m: int) -> int:
    return -(-v // m) * m


def _sublane_pack(itemsize: int) -> int:
    # f32 -> 8, bf16/f16 -> 16, int8/fp8 -> 32 sublanes per vreg.
    return {4: 8, 2: 16, 1: 32}.get(itemsize, 8)


def _tpu_config():
    """(vmem_limit_bytes, max_tile_bytes, min_row_grid_steps), gated on TPU gen."""
    vmem_cap = None
    try:
        vmem_cap = int(pltpu.get_tpu_info().vmem_capacity_bytes)
    except Exception:
        vmem_cap = None
    if vmem_cap is not None and vmem_cap >= 96 * 1024 * 1024:
        # v5e / v6e: 128 MiB physical VMEM, single TensorCore.
        return 64 * 1024 * 1024, 8 * 1024 * 1024, 1
    # v7x (64 MiB VMEM, 2 TensorCores) or unknown: conservative budget,
    # and split the row grid so both cores stream.
    return 32 * 1024 * 1024, 4 * 1024 * 1024, 2


def _pick_lane_width(total, itemsize, sub, max_tile_bytes):
    """Largest multiple-of-128 divisor of `total` keeping a (sub, G) tile in
    budget, preferring G with total // G >= sub (no wasted sublanes).
    Returns None if no lane-dense factorisation exists."""
    if total % 128 != 0:
        return None
    max_g = max(1, (max_tile_bytes // (itemsize * sub)) // 128)
    best_any = None
    for g in range(min(total // 128, max_g), 0, -1):
        lane = 128 * g
        if total % lane == 0:
            if best_any is None:
                best_any = lane
            if total // lane >= sub:
                return lane
    return best_any


def _tiles_for_slab(rows, cols, itemsize, sub, max_tile_bytes, min_steps):
    """Pick (tm, tn, grid).  Budget is charged on the lane-PADDED width; a
    column-tiled 2-D grid kicks in when one padded row tile exceeds budget."""
    padded_cols = _round_up(cols, 128)
    row_bytes = padded_cols * itemsize
    if row_bytes * sub > max_tile_bytes:
        # Column tiling: lane tile is a multiple of 128 (never a partial store
        # except the final block).
        tn = max(128, (max_tile_bytes // (sub * itemsize)) // 128 * 128)
        tm = max(sub, (max_tile_bytes // (tn * itemsize)) // sub * sub)
    else:
        tn = cols
        tm = max(sub, (max_tile_bytes // row_bytes) // sub * sub)
    # v7x megacore: keep >= min_steps row-grid iterations when rows allow it.
    if min_steps > 1 and rows >= min_steps * sub:
        tm = min(tm, _round_up(pl.cdiv(rows, min_steps), sub))
    if tm >= rows:
        tm = rows
    if tn >= cols:
        grid = (pl.cdiv(rows, tm),)
    else:
        grid = (pl.cdiv(rows, tm), pl.cdiv(cols, tn))
    return tm, tn, grid


# ---------------------------------------------------------------------------
# Wrapper
# ---------------------------------------------------------------------------

def moth_relu_2d(x: jax.Array, abs_channels, *, max_tile_bytes=None,
                 donate: bool = False) -> jax.Array:
    """MothReLU2d forward.  x is NCHW; abs_channels is an int or a float
    fraction of C (PyTorch truncation semantics).  Set donate=True only if
    the caller does not use x afterwards (enables in-place buffer reuse)."""
    n, c, h, w = x.shape
    if isinstance(abs_channels, float):
        abs_ch = int(abs_channels * c)
    else:
        abs_ch = int(abs_channels)
    if abs_ch < 0:                       # mimic python negative slicing
        abs_ch += c
    abs_ch = max(0, min(abs_ch, c))

    rows, cols, total = n * c, h * w, n * c * h * w
    itemsize = jnp.dtype(x.dtype).itemsize
    sub = _sublane_pack(itemsize)

    vmem_limit, tile_budget, min_steps = _tpu_config()
    if max_tile_bytes is not None:
        tile_budget = int(max_tile_bytes)

    uniform = abs_ch <= 0 or abs_ch >= c
    flat_g = _pick_lane_width(total, itemsize, sub, tile_budget)

    # ---- choose slab layout ----
    if uniform:
        layout = "uniform"
        slab_shape = (total // flat_g, flat_g) if flat_g is not None else (rows, cols)
    elif cols % 128 != 0 and flat_g is not None and total < 2 ** 31:
        layout = "flat_masked"            # lane-dense, per-element channel test
        slab_shape = (total // flat_g, flat_g)
    else:
        layout = "row_masked"             # (N*C, H*W) slab, per-row mask
        slab_shape = (rows, cols)

    srows, scols = slab_shape
    tm, tn, grid = _tiles_for_slab(srows, scols, itemsize, sub,
                                   tile_budget, min_steps)

    if layout == "uniform":
        kernel = _abs_kernel if abs_ch >= c else _relu_kernel
    elif layout == "flat_masked":
        kernel = functools.partial(_flat_masked_kernel, tile_rows=tm,
                                   lane_width=flat_g, hw=cols,
                                   num_channels=c, abs_channels=abs_ch)
    else:
        kernel = functools.partial(_row_masked_kernel, tile_rows=tm,
                                   num_channels=c, abs_channels=abs_ch)

    if len(grid) == 1:
        spec = pl.BlockSpec((tm, tn), lambda i: (i, 0))
        semantics = ("parallel",)
    else:
        spec = pl.BlockSpec((tm, tn), lambda i, j: (i, j))
        semantics = ("parallel", "parallel")

    slab = x.reshape(slab_shape)
    out = pl.pallas_call(
        kernel,
        out_shape=jax.ShapeDtypeStruct(slab_shape, x.dtype),
        grid=grid,
        in_specs=[spec],
        out_specs=spec,
        compiler_params=pltpu.CompilerParams(
            dimension_semantics=semantics,
            vmem_limit_bytes=vmem_limit,
        ),
        cost_estimate=pl.CostEstimate(
            flops=total, transcendentals=0,
            bytes_accessed=2 * total * itemsize),
        input_output_aliases={0: 0} if donate else {},
    )(slab)

    return out.reshape(n, c, h, w)


# ---------------------------------------------------------------------------
# Reference + self-test
# ---------------------------------------------------------------------------

def _reference(x: jax.Array, abs_channels) -> jax.Array:
    n, c, h, w = x.shape
    if isinstance(abs_channels, float):
        abs_ch = int(abs_channels * c)
    else:
        abs_ch = int(abs_channels)
    abs_data = jnp.abs(x[:, :abs_ch])
    relu_data = jnp.maximum(x[:, abs_ch:], 0.0)
    return jnp.concatenate([abs_data, relu_data], axis=1)


if __name__ == "__main__":
    key = jax.random.PRNGKey(0)
    k1, k2, k3, k4 = jax.random.split(key, 4)

    # 1) Canonical small NCHW shape, float-fraction split, 128-multiple H*W
    #    -> row-slab path with per-row channel mask.
    x1 = jax.random.normal(k1, (2, 4, 16, 16), dtype=jnp.float32)
    out1 = jax.block_until_ready(moth_relu_2d(x1, 0.5))
    assert out1.shape == x1.shape and out1.dtype == x1.dtype
    assert bool(jnp.array_equal(out1, _reference(x1, 0.5))), "case 1 mismatch"

    # 2) Integer split + tiny tile budget -> multi-step row grid exercises the
    #    program_id-offset channel mask across tiles.
    x2 = jax.random.normal(k2, (2, 8, 16, 16), dtype=jnp.float32)
    out2 = jax.block_until_ready(
        moth_relu_2d(x2, 3, max_tile_bytes=8 * 16 * 16 * 4))
    assert bool(jnp.array_equal(out2, _reference(x2, 3))), "case 2 mismatch"

    # 3) Non-128-multiple spatial size (14x14) -> lane-dense flat slab with a
    #    per-element channel test (avoids masked partial stores).
    x3 = jax.random.normal(k3, (4, 8, 14, 14), dtype=jnp.float32)
    out3 = jax.block_until_ready(moth_relu_2d(x3, 0.25))
    assert bool(jnp.array_equal(out3, _reference(x3, 0.25))), "case 3 mismatch"

    # 4) Degenerate split (all-ReLU) + bf16 -> uniform lane-dense path with
    #    16-row sublane packing.
    x4 = jax.random.normal(k4, (2, 4, 16, 16), dtype=jnp.bfloat16)
    out4 = jax.block_until_ready(moth_relu_2d(x4, 0))
    assert bool(jnp.array_equal(out4, _reference(x4, 0))), "case 4 mismatch"

    print("KERNEL_OK")
</pallas_src>

<mosaic_0001>
module attributes {stable_mosaic.version = 11 : i64} {
  func.func @_row_masked_kernel(%arg0: i32, %arg1: memref<8x256xf32, #tpu.memory_space<vmem>>, %arg2: memref<8x256xf32, #tpu.memory_space<vmem>>) attributes {dimension_semantics = [#tpu.dimension_semantics<parallel>], iteration_bounds = array<i64: 1>, scalar_prefetch = 0 : i64, scratch_operands = 0 : i64, tpu.core_type = #tpu.core_type<tc>, window_params = [{transform_indices = @transform_0, window_bounds = array<i64: 8, 256>}, {transform_indices = @transform_1, window_bounds = array<i64: 8, 256>}]} {
    %c0 = arith.constant 0 : index
    %c0_0 = arith.constant 0 : index
    %0 = vector.load %arg1[%c0, %c0_0] : memref<8x256xf32, #tpu.memory_space<vmem>>, vector<8x256xf32>
    %c8_i32 = arith.constant 8 : i32
    %1 = arith.muli %arg0, %c8_i32 : i32
    %2 = tpu.iota {dimensions = array<i32: 0>} : vector<8x1xi32>
    %3 = vector.broadcast %1 : i32 to vector<8x1xi32>
    %4 = arith.addi %3, %2 : vector<8x1xi32>
    %c4_i32 = arith.constant 4 : i32
    %c0_i32 = arith.constant 0 : i32
    %5 = arith.cmpi eq, %c4_i32, %c0_i32 : i32
    %c1_i32 = arith.constant 1 : i32
    %6 = arith.select %5, %c1_i32, %c4_i32 : i32
    %7 = vector.broadcast %6 : i32 to vector<8x1xi32>
    %8 = arith.remsi %4, %7 : vector<8x1xi32>
    %c0_i32_1 = arith.constant 0 : i32
    %9 = vector.broadcast %c0_i32_1 : i32 to vector<8x1xi32>
    %10 = arith.cmpi ne, %8, %9 : vector<8x1xi32>
    %c0_i32_2 = arith.constant 0 : i32
    %11 = vector.broadcast %c0_i32_2 : i32 to vector<8x1xi32>
    %12 = arith.cmpi slt, %8, %11 : vector<8x1xi32>
    %c0_i32_3 = arith.constant 0 : i32
    %13 = arith.cmpi slt, %6, %c0_i32_3 : i32
    %14 = vector.broadcast %13 : i1 to vector<8x1xi1>
    %15 = vector.broadcast %14 : vector<8x1xi1> to vector<8x1xi1>
    %16 = arith.xori %12, %15 : vector<8x1xi1>
    %17 = arith.andi %16, %10 : vector<8x1xi1>
    %18 = vector.broadcast %6 : i32 to vector<8x1xi32>
    %19 = arith.addi %8, %18 : vector<8x1xi32>
    %20 = arith.select %17, %19, %8 : vector<8x1xi1>, vector<8x1xi32>
    %c2_i32 = arith.constant 2 : i32
    %21 = vector.broadcast %c2_i32 : i32 to vector<8x1xi32>
    %22 = arith.cmpi slt, %20, %21 : vector<8x1xi32>
    %23 = math.absf %0 : vector<8x256xf32>
    %cst = arith.constant 0.000000e+00 : f32
    %24 = vector.broadcast %cst : f32 to vector<8x256xf32>
    %25 = arith.maximumf %0, %24 : vector<8x256xf32>
    %26 = vector.shape_cast %22 : vector<8x1xi1> to vector<8x1xi1>
    %27 = vector.broadcast %26 : vector<8x1xi1> to vector<8x256xi1>
    %28 = arith.select %27, %23, %25 : vector<8x256xi1>, vector<8x256xf32>
    %c0_4 = arith.constant 0 : index
    %c0_5 = arith.constant 0 : index
    %29 = vector.load %arg2[%c0_4, %c0_5] : memref<8x256xf32, #tpu.memory_space<vmem>>, vector<8x256xf32>
    tpu.vector_store %arg2[%c0_4, %c0_5], %28 {strides = array<i32>} : memref<8x256xf32, #tpu.memory_space<vmem>>, vector<8x256xf32>,
    return
  }
  func.func @transform_0(%arg0: i32) -> (i32, i32) {
    %c0_i32 = arith.constant 0 : i32
    %c0_i32_0 = arith.constant 0 : i32
    return %arg0, %c0_i32 : i32, i32
  }
  func.func @transform_1(%arg0: i32) -> (i32, i32) {
    %c0_i32 = arith.constant 0 : i32
    %c0_i32_0 = arith.constant 0 : i32
    return %arg0, %c0_i32 : i32, i32
  }
}

</mosaic_0001>

<llo_original>
// kernel: tpu_custom_call.1
$region0: #{tpu_custom_call.1}
  #allocation0 [shape = 'u32[]', space=smem, size = 0x4, offset = 0x4, fixed_abs, tag = 'smem constant byte address 0x4 - core index']
  #allocation1 [shape = 'u32[72,128]{1,0:T(1,128)}', space=vmem, size = 0x9000, scoped, tag = 'internal scratch']
  %s0 = inlined_call_operand.hbm [shape: f32[8,256], index: 0, kind: input, shape index: {}]
  %s1 = inlined_call_operand.hbm [shape: f32[8,256], index: 1, kind: output, shape index: {}]
  %s2 = sld [smem:[#allocation0]]
  $region18: #{tpu_custom_call.1} parent=0
    _
  %s4 = ssub.s32 1, %s2
  %s5 = scalar_select 0, %s4, %s2
  $region1: #{tpu_custom_call.1} parent=0
    #allocation2 [shape = 'u8[8192]{0}', space=vmem, size = 0x2000, scoped, tag = 'input window, operand 0, single buffered']
    #allocation3 [shape = 's32[1]{0}', space=sflag, size = 0x4, scoped, tag = 'scoped memory for tpu_custom_call.1']
    #allocation4 [shape = 's32[1]{0}', space=sflag, size = 0x4, scoped, tag = 'scoped memory for tpu_custom_call.1']
    #allocation5 [shape = 'u8[8192]{0}', space=vmem, size = 0x2000, scoped, tag = 'output window, operand 0, single buffered']
    %6 = vsyncpa [#allocation3], 0
    %7 = vsyncpa [#allocation4], 0
    // Predicated region
    $region2: #{tpu_custom_call.1} parent=1 // pred_check
      _
    $region3: #{tpu_custom_call.1} parent=1 // pred_check_branch
      %9 = sbr.rel (0) target = $region5
    $region4: #{tpu_custom_call.1} parent=1 // pred_region
      %11 = vsyncadd [#allocation3], 0
      %s13 = sshll.u32 %s0, 4
      %s14 = int_to_ptr.hbm [resolvable:$true] %s13
      %s15 = sshll.u32 [#allocation2], 4
      %s16 = int_to_ptr.vmem [resolvable:$true] %s15
      %18 = dma.hbm_to_vmem [thread:$0]  %s14, 256, %s16, [#allocation3]
    $region5: #{tpu_custom_call.1} parent=1 // pred_fallthru
      _
    // Predicated region
    $region6: #{tpu_custom_call.1} parent=1 // pred_check
      _
    $region7: #{tpu_custom_call.1} parent=1 // pred_check_branch
      %20 = sbr.rel (0) target = $region9
    $region8: #{tpu_custom_call.1} parent=1 // pred_region
      %22 = dma.done [#allocation3], 256
    $region9: #{tpu_custom_call.1} parent=1 // pred_fallthru
      _
    %v23 = vld [vmem:[#allocation2] sm:$0xff]
    %v24 = vld [vmem:[#allocation2 + $0x8] sm:$0xff]
    %s25 = smul.u32 0, 8
    %v26 = vlaneseq
    %v27 = vshrl.u32 %v26, 7
    %v28 = vstv %s25
    %v29 = vadd.s32 %v28, %v27
    %vm30 = vcmp.lt.s32.totalorder %v29, 0
    %v31 = vsub.s32 0, %v29
    %v32 = vsel %vm30, %v31, %v29
    %v33 = vshrl.u32 %v32, 2
    %v34 = vand.u32 %v32, 3
    %v35 = vsub.s32 0, %v34
    %v36 = vsel %vm30, %v35, %v34
    %vm37 = vcmp.ne.s32.totalorder %v36, 0
    %vm38 = vcmp.lt.s32.totalorder %v36, 0
    %vm39 = vmand %vm38, %vm37
    %v40 = vadd.s32 %v36, 4
    %v41 = vsel %vm39, %v40, %v36
    %vm42 = vcmp.lt.s32.totalorder %v41, 2
    %v43 = vand.u32 2147483647, %v23
    %v44 = vand.u32 2147483647, %v24
    %v45 = vmax.f32 %v23, 0.0
    %v46 = vmax.f32 %v24, 0.0
    %v47 = vsel %vm42, 1, 0
    %vm48 = vcmp.eq.s32.totalorder %v47, 1
    %v49 = vsel %vm48, %v43, %v45
    %v50 = vsel %vm48, %v44, %v46
    %51 = vst [vmem:[#allocation5] sm:$0xff] %v49
    %52 = vst [vmem:[#allocation5 + $0x8] sm:$0xff] %v50
    // Predicated region
    $region10: #{tpu_custom_call.1} parent=1 // pred_check
      _
    $region11: #{tpu_custom_call.1} parent=1 // pred_check_branch
      %54 = sbr.rel (0) target = $region13
    $region12: #{tpu_custom_call.1} parent=1 // pred_region
      %56 = vsyncadd [#allocation4], 0
      %s58 = sshll.u32 [#allocation5], 4
      %s59 = int_to_ptr.vmem [resolvable:$true] %s58
      %s60 = sshll.u32 %s1, 4
      %s61 = int_to_ptr.hbm [resolvable:$true] %s60
      %63 = dma.vmem_to_hbm [thread:$0]  %s59, 256, %s61, [#allocation4]
    $region13: #{tpu_custom_call.1} parent=1 // pred_fallthru
      _
    // Predicated region
    $region14: #{tpu_custom_call.1} parent=1 // pred_check
      _
    $region15: #{tpu_custom_call.1} parent=1 // pred_check_branch
      %65 = sbr.rel (0) target = $region17
    $region16: #{tpu_custom_call.1} parent=1 // pred_region
      %67 = dma.done [#allocation4], 256
    $region17: #{tpu_custom_call.1} parent=1 // pred_fallthru
      _
    %68 = vsyncpa [#allocation3], 1
    %69 = vsyncpa [#allocation4], 1

</llo_original>
